<compile_context>
chip_gen: v5e
topology: v5e:2x2
jax: 0.10.0
libtpu: 0.0.40
codegen_flags: <defaults>
</compile_context>

<pallas_src>
import jax
import jax.numpy as jnp
from jax import lax
from jax.experimental import pallas as pl
from jax.experimental.pallas import tpu as pltpu

# Scaled-down feature dims (original: N=1024, S=4800, V=4096) to keep the
# example small.
N_FEATURE_DIM = 128
S_FEATURE_DIM = 256
V_FEATURE_DIM = 256


# ---------------------------------------------------------------------------
# Fused kernel: K-tiled (Linear x2) with VMEM accumulators  ->  L2-normalize
#               ->  pairwise interaction matmul  ->  score / offset losses.
# ---------------------------------------------------------------------------
def _make_tall_kernel(nv):
    """nv = number of K tiles belonging to the v-projection (the rest are s)."""

    def kernel(x_ref, w_ref, bv_ref, bs_ref, wbm_ref, bb_ref, off_ref,
               bm_ref, loss_ref, acc_v_ref, acc_s_ref):
        B, N = acc_v_ref.shape
        k = pl.program_id(0)
        n_k = pl.num_programs(0)

        # ---- init accumulators on the first K step -------------------------
        @pl.when(k == 0)
        def _():
            acc_v_ref[...] = jnp.zeros_like(acc_v_ref)
            acc_s_ref[...] = jnp.zeros_like(acc_s_ref)

        # ---- partial projection matmul (bf16 MXU operands, f32 accumulate) --
        partial = jnp.dot(x_ref[...], w_ref[...],
                          preferred_element_type=jnp.float32)        # [B, N] f32

        @pl.when(k < nv)
        def _():
            acc_v_ref[...] += partial

        @pl.when(k >= nv)
        def _():
            acc_s_ref[...] += partial

        # ---- finalize on the last K step ------------------------------------
        @pl.when(k == n_k - 1)
        def _():
            def normalize(y):
                ss = jnp.sum(y * y, axis=-1, keepdims=True)
                # x / max(||x||, 1e-12) == x * rsqrt(max(||x||^2, 1e-24)); EUP rsqrt
                return y * lax.rsqrt(jnp.maximum(ss, 1e-24))

            v = normalize(acc_v_ref[...] + bv_ref[...])               # [B, N] f32
            s = normalize(acc_s_ref[...] + bs_ref[...])               # [B, N] f32

            w1 = wbm_ref[:, 0:N]            # multiplies (v * s)      [3, N]
            w2 = wbm_ref[:, N:2 * N]        # multiplies v            [3, N]
            w3 = wbm_ref[:, 2 * N:3 * N]    # multiplies s            [3, N]

            # batch_matrix[kk,i,j] = sum_n (v[i,n]*w1[kk,n] + w3[kk,n]) * s[j,n]
            #                        + sum_n v[i,n]*w2[kk,n] + bias[kk]
            # lhs built with a broadcast (no per-channel concat copies).
            lhs = (v[None, :, :] * w1[:, None, :]
                   + w3[:, None, :]).reshape(3 * B, N)                # [3B, N]
            contract_last = (((1,), (1,)), ((), ()))                  # lhs.T? no: last dims
            mm = lax.dot_general(lhs, s, contract_last,
                                 preferred_element_type=jnp.float32)  # [3B, B]

            row = lax.broadcasted_iota(jnp.int32, (B, B), 0)
            col = lax.broadcasted_iota(jnp.int32, (B, B), 1)
            eye = (row == col).astype(jnp.float32)

            chans = []
            for kk in range(3):
                # v-dependent rank-1 term on the VPU/XLU (skip a 3-lane MXU push).
                t2_k = jnp.sum(v * w2[kk:kk + 1, :], axis=-1, keepdims=True)  # [B,1]
                bm_k = mm[kk * B:(kk + 1) * B, :] + t2_k + bb_ref[kk]         # [B,B]
                bm_ref[kk] = bm_k           # channel-first, lane-dense store
                chans.append(bm_k)
            score_mat, l_mat, r_mat = chans

            # ---- score loss (numerically stable softplus) -------------------
            z = score_mat * (1.0 - 2.0 * eye)
            softplus = jnp.maximum(z, 0.0) + jnp.log(1.0 + jnp.exp(-jnp.abs(z)))
            alpha = (1.0 - eye) * (1.0 / B) + eye
            score_loss = jnp.sum(softplus * alpha) * (1.0 / (B * B))

            # ---- offset loss -------------------------------------------------
            l_diag = jnp.sum(l_mat * eye, axis=1, keepdims=True)      # [B, 1]
            r_diag = jnp.sum(r_mat * eye, axis=1, keepdims=True)      # [B, 1]
            off = off_ref[...]                                        # [B, 2]
            diff = jnp.abs(l_diag - off[:, 0:1]) + jnp.abs(r_diag - off[:, 1:2])
            offset_loss = jnp.sum(diff) * (1.0 / (2 * B))

            # scalar SMEM outputs: [loss, score_loss, offset_loss]
            loss_ref[0] = score_loss + offset_loss * 1e-4
            loss_ref[1] = score_loss
            loss_ref[2] = offset_loss

    return kernel


def tall_forward(params, v_es, s_es, offset_es, *, tk=128):
    B = v_es.shape[0]
    V = v_es.shape[1]
    S = s_es.shape[1]
    N = params["v_b"].shape[1]
    assert V % tk == 0 and S % tk == 0, "contraction dims must tile by tk"
    nv = V // tk
    n_k = (V + S) // tk

    # Activations are tiny compared to the weights; cast/concat per call.
    x_cat = jnp.concatenate([v_es, s_es], axis=1).astype(jnp.bfloat16)  # [B, V+S]

    grid_spec = pltpu.PrefetchScalarGridSpec(
        num_scalar_prefetch=0,
        grid=(n_k,),
        in_specs=[
            pl.BlockSpec((B, tk), lambda k: (0, k)),            # x_cat K tile (bf16)
            pl.BlockSpec((tk, N), lambda k: (k, 0)),            # w_cat K tile (bf16 at rest)
            pl.BlockSpec((1, N), lambda k: (0, 0)),             # v bias (f32, resident)
            pl.BlockSpec((1, N), lambda k: (0, 0)),             # s bias (f32, resident)
            pl.BlockSpec((3, 3 * N), lambda k: (0, 0)),         # batch_matrix_fc weight
            pl.BlockSpec(memory_space=pltpu.MemorySpace.SMEM),  # batch_matrix_fc bias (3,)
            pl.BlockSpec((B, 2), lambda k: (0, 0)),             # offset_es
        ],
        out_specs=(
            pl.BlockSpec((3, B, B), lambda k: (0, 0, 0)),       # channel-first interaction
            pl.BlockSpec(memory_space=pltpu.MemorySpace.SMEM),  # (3,) scalar losses
        ),
        scratch_shapes=[
            pltpu.VMEM((B, N), jnp.float32),    # v-projection f32 accumulator
            pltpu.VMEM((B, N), jnp.float32),    # s-projection f32 accumulator
        ],
    )

    bm_cf, losses = pl.pallas_call(
        _make_tall_kernel(nv),
        out_shape=(
            jax.ShapeDtypeStruct((3, B, B), jnp.float32),
            jax.ShapeDtypeStruct((3,), jnp.float32),
        ),
        grid_spec=grid_spec,
        compiler_params=pltpu.CompilerParams(
            # K axis is a reduction (accumulators) -> "arbitrary".
            dimension_semantics=("arbitrary",),
            # Sized for v7x (64 MiB physical / 32 MiB scoped default); the
            # tk-tiled footprint is far below this even at production dims.
            vmem_limit_bytes=32 * 1024 * 1024,
        ),
    )(x_cat, params["w_cat"], params["v_b"], params["s_b"],
      params["bm_w"], params["bm_b"], offset_es)

    # bm_cf stays channel-first [3, B, B] (lane-dense): k=0 score matrix,
    # k=1/k=2 the l/r offset matrices — same content as PyTorch's [B, B, 3].
    return bm_cf, losses[0], losses[1], losses[2]


# ---------------------------------------------------------------------------
# Pure-JAX f32 reference (mirrors the PyTorch forward) for verification.
# ---------------------------------------------------------------------------
def tall_reference(params, v_es, s_es, offset_es):
    B = v_es.shape[0]
    v = v_es @ params["v_w"].T + params["v_b"]
    s = s_es @ params["s_w"].T + params["s_b"]
    v = v / jnp.maximum(jnp.linalg.norm(v, axis=1, keepdims=True), 1e-12)
    s = s / jnp.maximum(jnp.linalg.norm(s, axis=1, keepdims=True), 1e-12)
    vb = jnp.repeat(v[:, None, :], B, axis=1)
    sb = jnp.repeat(s[None, :, :], B, axis=0)
    bm = jnp.concatenate([vb * sb, vb, sb], axis=2)
    bm = bm @ params["bm_w"].T + params["bm_b"]                # [B, B, 3]
    score, l, r = bm[..., 0], bm[..., 1], bm[..., 2]
    all1 = jnp.ones((B, B), jnp.float32)
    eye = jnp.eye(B, dtype=jnp.float32)
    score_loss = jnp.log(all1 + jnp.exp(score * (all1 - 2 * eye)))
    alpha = (all1 - eye) * (1.0 / B) + eye
    score_loss = jnp.mean(score_loss * alpha)
    l_diag = jnp.squeeze((l * eye) @ jnp.ones((B, 1)), 1)
    r_diag = jnp.squeeze((r * eye) @ jnp.ones((B, 1)), 1)
    offset_loss = jnp.mean(jnp.abs(jnp.stack([l_diag, r_diag], 1) - offset_es))
    loss = score_loss + offset_loss * 0.0001
    return bm, loss, score_loss, offset_loss


def init_params(key):
    ks = jax.random.split(key, 6)

    def linear(kw, kb, fan_in, fan_out):
        bound = 1.0 / jnp.sqrt(jnp.float32(fan_in))
        w = jax.random.uniform(kw, (fan_out, fan_in), jnp.float32, -bound, bound)
        b = jax.random.uniform(kb, (fan_out,), jnp.float32, -bound, bound)
        return w, b

    v_w, v_b = linear(ks[0], ks[1], V_FEATURE_DIM, N_FEATURE_DIM)
    s_w, s_b = linear(ks[2], ks[3], S_FEATURE_DIM, N_FEATURE_DIM)
    bm_w, bm_b = linear(ks[4], ks[5], N_FEATURE_DIM * 3, 3)

    ref_params = {"v_w": v_w, "v_b": v_b, "s_w": s_w, "s_b": s_b,
                  "bm_w": bm_w, "bm_b": bm_b}
    kernel_params = {
        # bf16 at rest, pre-transposed and K-concatenated: [V+S, N].  Cast is
        # done ONCE here, not per call, so the kernel's weight DMA is the only
        # weight HBM traffic per forward.
        "w_cat": jnp.concatenate([v_w.T, s_w.T], axis=0).astype(jnp.bfloat16),
        "v_b": v_b.reshape(1, -1),          # f32
        "s_b": s_b.reshape(1, -1),          # f32
        "bm_w": bm_w,                       # [3, 3N] f32 (tiny, VMEM-resident)
        "bm_b": bm_b,                       # (3,) f32 -> SMEM
    }
    return ref_params, kernel_params


if __name__ == "__main__":
    key = jax.random.PRNGKey(0)
    k_p, k_v, k_s, k_o = jax.random.split(key, 4)

    B = 8
    ref_params, kernel_params = init_params(k_p)
    v_es = jax.random.normal(k_v, (B, V_FEATURE_DIM), jnp.float32)
    s_es = jax.random.normal(k_s, (B, S_FEATURE_DIM), jnp.float32)
    offset_es = jax.random.normal(k_o, (B, 2), jnp.float32)

    out = tall_forward(kernel_params, v_es, s_es, offset_es)
    bm_cf, loss, score_loss, offset_loss = jax.block_until_ready(out)

    bm_r, loss_r, score_r, off_r = tall_reference(ref_params, v_es, s_es, offset_es)
    bm_r_cf = jnp.transpose(bm_r, (2, 0, 1))   # reference -> channel-first

    assert bm_cf.shape == (3, B, B)
    # bf16 MXU operands for the projections; compare against the f32
    # reference with correspondingly loose tolerances.
    assert jnp.allclose(bm_cf, bm_r_cf, atol=2e-2, rtol=2e-2)
    assert jnp.allclose(loss, loss_r, atol=1e-2, rtol=1e-2)
    assert jnp.allclose(score_loss, score_r, atol=1e-2, rtol=1e-2)
    assert jnp.allclose(offset_loss, off_r, atol=1e-2, rtol=1e-2)

    print("KERNEL_OK")
</pallas_src>

<mosaic_0001>
module attributes {stable_mosaic.version = 11 : i64} {
  func.func @kernel(%arg0: i32, %arg1: memref<8x128xbf16, #tpu.memory_space<vmem>>, %arg2: memref<128x128xbf16, #tpu.memory_space<vmem>>, %arg3: memref<1x128xf32, #tpu.memory_space<vmem>>, %arg4: memref<1x128xf32, #tpu.memory_space<vmem>>, %arg5: memref<3x384xf32, #tpu.memory_space<vmem>>, %arg6: memref<3xf32, #tpu.memory_space<smem>>, %arg7: memref<8x2xf32, #tpu.memory_space<vmem>>, %arg8: memref<3x8x8xf32, #tpu.memory_space<vmem>>, %arg9: memref<3xf32, #tpu.memory_space<smem>>, %arg10: memref<8x128xf32, #tpu.memory_space<vmem>>, %arg11: memref<8x128xf32, #tpu.memory_space<vmem>>) attributes {dimension_semantics = [#tpu.dimension_semantics<arbitrary>], iteration_bounds = array<i64: 4>, scalar_prefetch = 0 : i64, scratch_operands = 2 : i64, tpu.core_type = #tpu.core_type<tc>, window_params = [{transform_indices = @transform_0, window_bounds = array<i64: 8, 128>}, {transform_indices = @transform_1, window_bounds = array<i64: 128, 128>}, {pipeline_mode = #tpu.pipeline_mode<synchronous>, transform_indices = @transform_2, window_bounds = array<i64: 1, 128>}, {pipeline_mode = #tpu.pipeline_mode<synchronous>, transform_indices = @transform_3, window_bounds = array<i64: 1, 128>}, {pipeline_mode = #tpu.pipeline_mode<synchronous>, transform_indices = @transform_4, window_bounds = array<i64: 3, 384>}, {transform_indices = @transform_5, window_bounds = array<i64: 3>}, {pipeline_mode = #tpu.pipeline_mode<synchronous>, transform_indices = @transform_6, window_bounds = array<i64: 8, 2>}, {pipeline_mode = #tpu.pipeline_mode<synchronous>, transform_indices = @transform_7, window_bounds = array<i64: 3, 8, 8>}, {transform_indices = @transform_8, window_bounds = array<i64: 3>}]} {
    %c0_i32 = arith.constant 0 : i32
    %0 = arith.cmpi eq, %arg0, %c0_i32 : i32
    %1 = arith.extui %0 : i1 to i32
    %c0_i32_0 = arith.constant 0 : i32
    %2 = arith.cmpi ne, %1, %c0_i32_0 : i32
    scf.if %2 {
      %cst_8 = arith.constant 0.000000e+00 : f32
      %15 = vector.broadcast %cst_8 : f32 to vector<8x128xf32>
      %c0_9 = arith.constant 0 : index
      %c0_10 = arith.constant 0 : index
      %16 = vector.load %arg10[%c0_9, %c0_10] : memref<8x128xf32, #tpu.memory_space<vmem>>, vector<8x128xf32>
      tpu.vector_store %arg10[%c0_9, %c0_10], %15 {strides = array<i32>} : memref<8x128xf32, #tpu.memory_space<vmem>>, vector<8x128xf32>,
      %cst_11 = arith.constant 0.000000e+00 : f32
      %17 = vector.broadcast %cst_11 : f32 to vector<8x128xf32>
      %c0_12 = arith.constant 0 : index
      %c0_13 = arith.constant 0 : index
      %18 = vector.load %arg11[%c0_12, %c0_13] : memref<8x128xf32, #tpu.memory_space<vmem>>, vector<8x128xf32>
      tpu.vector_store %arg11[%c0_12, %c0_13], %17 {strides = array<i32>} : memref<8x128xf32, #tpu.memory_space<vmem>>, vector<8x128xf32>,
    } else {
    }
    %c0 = arith.constant 0 : index
    %c0_1 = arith.constant 0 : index
    %3 = vector.load %arg1[%c0, %c0_1] : memref<8x128xbf16, #tpu.memory_space<vmem>>, vector<8x128xbf16>
    %c0_2 = arith.constant 0 : index
    %c0_3 = arith.constant 0 : index
    %4 = vector.load %arg2[%c0_2, %c0_3] : memref<128x128xbf16, #tpu.memory_space<vmem>>, vector<128x128xbf16>
    %cst = arith.constant dense<0.000000e+00> : vector<8x128xf32>
    %5 = tpu.matmul %3, %4, %cst {dimension_numbers = #tpu.dot_dimension_numbers<[1], [0], [0], [1], [0, 0, 1, 1], [], []>} : vector<8x128xbf16>, vector<128x128xbf16>, vector<8x128xf32> -> vector<8x128xf32>
    %c2_i32 = arith.constant 2 : i32
    %6 = arith.cmpi slt, %arg0, %c2_i32 : i32
    %7 = arith.extui %6 : i1 to i32
    %c0_i32_4 = arith.constant 0 : i32
    %8 = arith.cmpi ne, %7, %c0_i32_4 : i32
    scf.if %8 {
      %c0_8 = arith.constant 0 : index
      %c0_9 = arith.constant 0 : index
      %15 = vector.load %arg10[%c0_8, %c0_9] : memref<8x128xf32, #tpu.memory_space<vmem>>, vector<8x128xf32>
      %16 = arith.addf %15, %5 : vector<8x128xf32>
      %c0_10 = arith.constant 0 : index
      %c0_11 = arith.constant 0 : index
      %17 = vector.load %arg10[%c0_10, %c0_11] : memref<8x128xf32, #tpu.memory_space<vmem>>, vector<8x128xf32>
      tpu.vector_store %arg10[%c0_10, %c0_11], %16 {strides = array<i32>} : memref<8x128xf32, #tpu.memory_space<vmem>>, vector<8x128xf32>,
    } else {
    }
    %c2_i32_5 = arith.constant 2 : i32
    %9 = arith.cmpi sge, %arg0, %c2_i32_5 : i32
    %10 = arith.extui %9 : i1 to i32
    %c0_i32_6 = arith.constant 0 : i32
    %11 = arith.cmpi ne, %10, %c0_i32_6 : i32
    scf.if %11 {
      %c0_8 = arith.constant 0 : index
      %c0_9 = arith.constant 0 : index
      %15 = vector.load %arg11[%c0_8, %c0_9] : memref<8x128xf32, #tpu.memory_space<vmem>>, vector<8x128xf32>
      %16 = arith.addf %15, %5 : vector<8x128xf32>
      %c0_10 = arith.constant 0 : index
      %c0_11 = arith.constant 0 : index
      %17 = vector.load %arg11[%c0_10, %c0_11] : memref<8x128xf32, #tpu.memory_space<vmem>>, vector<8x128xf32>
      tpu.vector_store %arg11[%c0_10, %c0_11], %16 {strides = array<i32>} : memref<8x128xf32, #tpu.memory_space<vmem>>, vector<8x128xf32>,
    } else {
    }
    %c3_i32 = arith.constant 3 : i32
    %12 = arith.cmpi eq, %arg0, %c3_i32 : i32
    %13 = arith.extui %12 : i1 to i32
    %c0_i32_7 = arith.constant 0 : i32
    %14 = arith.cmpi ne, %13, %c0_i32_7 : i32
    scf.if %14 {
      %c0_8 = arith.constant 0 : index
      %c0_9 = arith.constant 0 : index
      %15 = vector.load %arg10[%c0_8, %c0_9] : memref<8x128xf32, #tpu.memory_space<vmem>>, vector<8x128xf32>
      %c0_10 = arith.constant 0 : index
      %c0_11 = arith.constant 0 : index
      %16 = vector.load %arg3[%c0_10, %c0_11] : memref<1x128xf32, #tpu.memory_space<vmem>>, vector<1x128xf32>
      %17 = vector.broadcast %16 : vector<1x128xf32> to vector<8x128xf32>
      %18 = arith.addf %15, %17 : vector<8x128xf32>
      %19 = arith.mulf %18, %18 : vector<8x128xf32>
      %cst_12 = arith.constant dense<0.000000e+00> : vector<8xf32>
      %20 = vector.multi_reduction <add>, %19, %cst_12 [1] : vector<8x128xf32> to vector<8xf32>
      %21 = vector.shape_cast %20 : vector<8xf32> to vector<8x1xf32>
      %cst_13 = arith.constant 1.000000e-24 : f32
      %22 = vector.broadcast %cst_13 : f32 to vector<8x1xf32>
      %23 = arith.maximumf %21, %22 : vector<8x1xf32>
      %24 = math.rsqrt %23 : vector<8x1xf32>
      %25 = vector.broadcast %24 : vector<8x1xf32> to vector<8x128xf32>
      %26 = arith.mulf %18, %25 : vector<8x128xf32>
      %c0_14 = arith.constant 0 : index
      %c0_15 = arith.constant 0 : index
      %27 = vector.load %arg11[%c0_14, %c0_15] : memref<8x128xf32, #tpu.memory_space<vmem>>, vector<8x128xf32>
      %c0_16 = arith.constant 0 : index
      %c0_17 = arith.constant 0 : index
      %28 = vector.load %arg4[%c0_16, %c0_17] : memref<1x128xf32, #tpu.memory_space<vmem>>, vector<1x128xf32>
      %29 = vector.broadcast %28 : vector<1x128xf32> to vector<8x128xf32>
      %30 = arith.addf %27, %29 : vector<8x128xf32>
      %31 = arith.mulf %30, %30 : vector<8x128xf32>
      %cst_18 = arith.constant dense<0.000000e+00> : vector<8xf32>
      %32 = vector.multi_reduction <add>, %31, %cst_18 [1] : vector<8x128xf32> to vector<8xf32>
      %33 = vector.shape_cast %32 : vector<8xf32> to vector<8x1xf32>
      %cst_19 = arith.constant 1.000000e-24 : f32
      %34 = vector.broadcast %cst_19 : f32 to vector<8x1xf32>
      %35 = arith.maximumf %33, %34 : vector<8x1xf32>
      %36 = math.rsqrt %35 : vector<8x1xf32>
      %37 = vector.broadcast %36 : vector<8x1xf32> to vector<8x128xf32>
      %38 = arith.mulf %30, %37 : vector<8x128xf32>
      %c0_20 = arith.constant 0 : index
      %c0_21 = arith.constant 0 : index
      %39 = vector.load %arg5[%c0_20, %c0_21] : memref<3x384xf32, #tpu.memory_space<vmem>>, vector<3x128xf32>
      %c0_22 = arith.constant 0 : index
      %c128 = arith.constant 128 : index
      %40 = vector.load %arg5[%c0_22, %c128] : memref<3x384xf32, #tpu.memory_space<vmem>>, vector<3x128xf32>
      %c0_23 = arith.constant 0 : index
      %c256 = arith.constant 256 : index
      %41 = vector.load %arg5[%c0_23, %c256] : memref<3x384xf32, #tpu.memory_space<vmem>>, vector<3x128xf32>
      %42 = vector.shape_cast %26 : vector<8x128xf32> to vector<1x8x128xf32>
      %43 = vector.shape_cast %39 : vector<3x128xf32> to vector<3x1x128xf32>
      %44 = vector.broadcast %42 : vector<1x8x128xf32> to vector<3x8x128xf32>
      %45 = vector.broadcast %43 : vector<3x1x128xf32> to vector<3x8x128xf32>
      %46 = arith.mulf %44, %45 : vector<3x8x128xf32>
      %47 = vector.shape_cast %41 : vector<3x128xf32> to vector<3x1x128xf32>
      %48 = vector.broadcast %47 : vector<3x1x128xf32> to vector<3x8x128xf32>
      %49 = arith.addf %46, %48 : vector<3x8x128xf32>
      %50 = vector.shape_cast %49 : vector<3x8x128xf32> to vector<24x128xf32>
      %cst_24 = arith.constant dense<0.000000e+00> : vector<24x8xf32>
      %51 = tpu.matmul %50, %38, %cst_24 {dimension_numbers = #tpu.dot_dimension_numbers<[1], [1], [0], [0], [0, 0, 1, 0], [], []>} : vector<24x128xf32>, vector<8x128xf32>, vector<24x8xf32> -> vector<24x8xf32>
      %52 = tpu.iota {dimensions = array<i32: 0>} : vector<8x8xi32>
      %53 = tpu.iota {dimensions = array<i32: 1>} : vector<8x8xi32>
      %54 = arith.cmpi eq, %52, %53 : vector<8x8xi32>
      %55 = arith.extui %54 : vector<8x8xi1> to vector<8x8xi32>
      %56 = arith.sitofp %55 : vector<8x8xi32> to vector<8x8xf32>
      %57 = vector.extract_strided_slice %40 {offsets = [0, 0], sizes = [1, 128], strides = [1, 1]} : vector<3x128xf32> to vector<1x128xf32>
      %58 = vector.broadcast %57 : vector<1x128xf32> to vector<8x128xf32>
      %59 = arith.mulf %26, %58 : vector<8x128xf32>
      %cst_25 = arith.constant dense<0.000000e+00> : vector<8xf32>
      %60 = vector.multi_reduction <add>, %59, %cst_25 [1] : vector<8x128xf32> to vector<8xf32>
      %61 = vector.shape_cast %60 : vector<8xf32> to vector<8x1xf32>
      %62 = vector.extract_strided_slice %51 {offsets = [0, 0], sizes = [8, 8], strides = [1, 1]} : vector<24x8xf32> to vector<8x8xf32>
      %63 = vector.broadcast %61 : vector<8x1xf32> to vector<8x8xf32>
      %64 = arith.addf %62, %63 : vector<8x8xf32>
      %c0_26 = arith.constant 0 : index
      %65 = memref.load %arg6[%c0_26] : memref<3xf32, #tpu.memory_space<smem>>
      %66 = vector.broadcast %65 : f32 to vector<8x8xf32>
      %67 = arith.addf %64, %66 : vector<8x8xf32>
      %c0_27 = arith.constant 0 : index
      %c0_28 = arith.constant 0 : index
      %c0_29 = arith.constant 0 : index
      %68 = vector.load %arg8[%c0_27, %c0_28, %c0_29] : memref<3x8x8xf32, #tpu.memory_space<vmem>>, vector<1x8x8xf32>
      %69 = vector.shape_cast %68 : vector<1x8x8xf32> to vector<8x8xf32>
      %70 = vector.shape_cast %67 : vector<8x8xf32> to vector<1x8x8xf32>
      tpu.vector_store %arg8[%c0_27, %c0_28, %c0_29], %70 {strides = array<i32>} : memref<3x8x8xf32, #tpu.memory_space<vmem>>, vector<1x8x8xf32>,
      %71 = vector.extract_strided_slice %40 {offsets = [1, 0], sizes = [1, 128], strides = [1, 1]} : vector<3x128xf32> to vector<1x128xf32>
      %72 = vector.broadcast %71 : vector<1x128xf32> to vector<8x128xf32>
      %73 = arith.mulf %26, %72 : vector<8x128xf32>
      %cst_30 = arith.constant dense<0.000000e+00> : vector<8xf32>
      %74 = vector.multi_reduction <add>, %73, %cst_30 [1] : vector<8x128xf32> to vector<8xf32>
      %75 = vector.shape_cast %74 : vector<8xf32> to vector<8x1xf32>
      %76 = vector.extract_strided_slice %51 {offsets = [8, 0], sizes = [8, 8], strides = [1, 1]} : vector<24x8xf32> to vector<8x8xf32>
      %77 = vector.broadcast %75 : vector<8x1xf32> to vector<8x8xf32>
      %78 = arith.addf %76, %77 : vector<8x8xf32>
      %c1 = arith.constant 1 : index
      %79 = memref.load %arg6[%c1] : memref<3xf32, #tpu.memory_space<smem>>
      %80 = vector.broadcast %79 : f32 to vector<8x8xf32>
      %81 = arith.addf %78, %80 : vector<8x8xf32>
      %c1_31 = arith.constant 1 : index
      %c0_32 = arith.constant 0 : index
      %c0_33 = arith.constant 0 : index
      %82 = vector.load %arg8[%c1_31, %c0_32, %c0_33] : memref<3x8x8xf32, #tpu.memory_space<vmem>>, vector<1x8x8xf32>
      %83 = vector.shape_cast %82 : vector<1x8x8xf32> to vector<8x8xf32>
      %84 = vector.shape_cast %81 : vector<8x8xf32> to vector<1x8x8xf32>
      tpu.vector_store %arg8[%c1_31, %c0_32, %c0_33], %84 {strides = array<i32>} : memref<3x8x8xf32, #tpu.memory_space<vmem>>, vector<1x8x8xf32>,
      %85 = vector.extract_strided_slice %40 {offsets = [2, 0], sizes = [1, 128], strides = [1, 1]} : vector<3x128xf32> to vector<1x128xf32>
      %86 = vector.broadcast %85 : vector<1x128xf32> to vector<8x128xf32>
      %87 = arith.mulf %26, %86 : vector<8x128xf32>
      %cst_34 = arith.constant dense<0.000000e+00> : vector<8xf32>
      %88 = vector.multi_reduction <add>, %87, %cst_34 [1] : vector<8x128xf32> to vector<8xf32>
      %89 = vector.shape_cast %88 : vector<8xf32> to vector<8x1xf32>
      %90 = vector.extract_strided_slice %51 {offsets = [16, 0], sizes = [8, 8], strides = [1, 1]} : vector<24x8xf32> to vector<8x8xf32>
      %91 = vector.broadcast %89 : vector<8x1xf32> to vector<8x8xf32>
      %92 = arith.addf %90, %91 : vector<8x8xf32>
      %c2 = arith.constant 2 : index
      %93 = memref.load %arg6[%c2] : memref<3xf32, #tpu.memory_space<smem>>
      %94 = vector.broadcast %93 : f32 to vector<8x8xf32>
      %95 = arith.addf %92, %94 : vector<8x8xf32>
      %c2_35 = arith.constant 2 : index
      %c0_36 = arith.constant 0 : index
      %c0_37 = arith.constant 0 : index
      %96 = vector.load %arg8[%c2_35, %c0_36, %c0_37] : memref<3x8x8xf32, #tpu.memory_space<vmem>>, vector<1x8x8xf32>
      %97 = vector.shape_cast %96 : vector<1x8x8xf32> to vector<8x8xf32>
      %98 = vector.shape_cast %95 : vector<8x8xf32> to vector<1x8x8xf32>
      tpu.vector_store %arg8[%c2_35, %c0_36, %c0_37], %98 {strides = array<i32>} : memref<3x8x8xf32, #tpu.memory_space<vmem>>, vector<1x8x8xf32>,
      %cst_38 = arith.constant 2.000000e+00 : f32
      %99 = vector.broadcast %cst_38 : f32 to vector<8x8xf32>
      %100 = arith.mulf %99, %56 : vector<8x8xf32>
      %cst_39 = arith.constant 1.000000e+00 : f32
      %101 = vector.broadcast %cst_39 : f32 to vector<8x8xf32>
      %102 = arith.subf %101, %100 : vector<8x8xf32>
      %103 = arith.mulf %67, %102 : vector<8x8xf32>
      %cst_40 = arith.constant 0.000000e+00 : f32
      %104 = vector.broadcast %cst_40 : f32 to vector<8x8xf32>
      %105 = arith.maximumf %103, %104 : vector<8x8xf32>
      %106 = math.absf %103 : vector<8x8xf32>
      %cst_41 = arith.constant 0.000000e+00 : f32
      %107 = vector.broadcast %cst_41 : f32 to vector<8x8xf32>
      %108 = arith.subf %107, %106 : vector<8x8xf32>
      %109 = math.exp %108 : vector<8x8xf32>
      %cst_42 = arith.constant 1.000000e+00 : f32
      %110 = vector.broadcast %cst_42 : f32 to vector<8x8xf32>
      %111 = arith.addf %110, %109 : vector<8x8xf32>
      %112 = math.log %111 : vector<8x8xf32>
      %113 = arith.addf %105, %112 : vector<8x8xf32>
      %cst_43 = arith.constant 1.000000e+00 : f32
      %114 = vector.broadcast %cst_43 : f32 to vector<8x8xf32>
      %115 = arith.subf %114, %56 : vector<8x8xf32>
      %cst_44 = arith.constant 1.250000e-01 : f32
      %116 = vector.broadcast %cst_44 : f32 to vector<8x8xf32>
      %117 = arith.mulf %115, %116 : vector<8x8xf32>
      %118 = arith.addf %117, %56 : vector<8x8xf32>
      %119 = arith.mulf %113, %118 : vector<8x8xf32>
      %120 = vector.shape_cast %119 : vector<8x8xf32> to vector<1x8x8xf32>
      %cst_45 = arith.constant dense<0.000000e+00> : vector<1xf32>
      %121 = vector.multi_reduction <add>, %120, %cst_45 [1, 2] : vector<1x8x8xf32> to vector<1xf32>
      %122 = vector.shape_cast %121 : vector<1xf32> to vector<1x1x1xf32>
      %123 = vector.extract %122[0, 0, 0] : f32 from vector<1x1x1xf32>
      %cst_46 = arith.constant 1.562500e-02 : f32
      %124 = arith.mulf %123, %cst_46 : f32
      %125 = arith.mulf %81, %56 : vector<8x8xf32>
      %cst_47 = arith.constant dense<0.000000e+00> : vector<8xf32>
      %126 = vector.multi_reduction <add>, %125, %cst_47 [1] : vector<8x8xf32> to vector<8xf32>
      %127 = vector.shape_cast %126 : vector<8xf32> to vector<8x1xf32>
      %128 = arith.mulf %95, %56 : vector<8x8xf32>
      %cst_48 = arith.constant dense<0.000000e+00> : vector<8xf32>
      %129 = vector.multi_reduction <add>, %128, %cst_48 [1] : vector<8x8xf32> to vector<8xf32>
      %130 = vector.shape_cast %129 : vector<8xf32> to vector<8x1xf32>
      %c0_49 = arith.constant 0 : index
      %c0_50 = arith.constant 0 : index
      %131 = vector.load %arg7[%c0_49, %c0_50] : memref<8x2xf32, #tpu.memory_space<vmem>>, vector<8x2xf32>
      %132 = vector.extract_strided_slice %131 {offsets = [0, 0], sizes = [8, 1], strides = [1, 1]} : vector<8x2xf32> to vector<8x1xf32>
      %133 = arith.subf %127, %132 : vector<8x1xf32>
      %134 = math.absf %133 : vector<8x1xf32>
      %135 = vector.extract_strided_slice %131 {offsets = [0, 1], sizes = [8, 1], strides = [1, 1]} : vector<8x2xf32> to vector<8x1xf32>
      %136 = arith.subf %130, %135 : vector<8x1xf32>
      %137 = math.absf %136 : vector<8x1xf32>
      %138 = arith.addf %134, %137 : vector<8x1xf32>
      %139 = vector.shape_cast %138 : vector<8x1xf32> to vector<1x8x1xf32>
      %cst_51 = arith.constant dense<0.000000e+00> : vector<1xf32>
      %140 = vector.multi_reduction <add>, %139, %cst_51 [1, 2] : vector<1x8x1xf32> to vector<1xf32>
      %141 = vector.shape_cast %140 : vector<1xf32> to vector<1x1x1xf32>
      %142 = vector.extract %141[0, 0, 0] : f32 from vector<1x1x1xf32>
      %cst_52 = arith.constant 6.250000e-02 : f32
      %143 = arith.mulf %142, %cst_52 : f32
      %cst_53 = arith.constant 9.99999974E-5 : f32
      %144 = arith.mulf %143, %cst_53 : f32
      %145 = arith.addf %124, %144 : f32
      %c0_54 = arith.constant 0 : index
      %146 = memref.load %arg9[%c0_54] : memref<3xf32, #tpu.memory_space<smem>>
      memref.store %145, %arg9[%c0_54] : memref<3xf32, #tpu.memory_space<smem>>
      %c1_55 = arith.constant 1 : index
      %147 = memref.load %arg9[%c1_55] : memref<3xf32, #tpu.memory_space<smem>>
      memref.store %124, %arg9[%c1_55] : memref<3xf32, #tpu.memory_space<smem>>
      %c2_56 = arith.constant 2 : index
      %148 = memref.load %arg9[%c2_56] : memref<3xf32, #tpu.memory_space<smem>>
      memref.store %143, %arg9[%c2_56] : memref<3xf32, #tpu.memory_space<smem>>
    } else {
    }
    return
  }
  func.func @transform_0(%arg0: i32) -> (i32, i32) {
    %c0_i32 = arith.constant 0 : i32
    %c0_i32_0 = arith.constant 0 : i32
    return %c0_i32, %arg0 : i32, i32
  }
  func.func @transform_1(%arg0: i32) -> (i32, i32) {
    %c0_i32 = arith.constant 0 : i32
    %c0_i32_0 = arith.constant 0 : i32
    return %arg0, %c0_i32 : i32, i32
  }
  func.func @transform_2(%arg0: i32) -> (i32, i32) {
    %c0_i32 = arith.constant 0 : i32
    %c0_i32_0 = arith.constant 0 : i32
    %c0_i32_1 = arith.constant 0 : i32
    return %c0_i32, %c0_i32_0 : i32, i32
  }
  func.func @transform_3(%arg0: i32) -> (i32, i32) {
    %c0_i32 = arith.constant 0 : i32
    %c0_i32_0 = arith.constant 0 : i32
    %c0_i32_1 = arith.constant 0 : i32
    return %c0_i32, %c0_i32_0 : i32, i32
  }
  func.func @transform_4(%arg0: i32) -> (i32, i32) {
    %c0_i32 = arith.constant 0 : i32
    %c0_i32_0 = arith.constant 0 : i32
    %c0_i32_1 = arith.constant 0 : i32
    return %c0_i32, %c0_i32_0 : i32, i32
  }
  func.func @transform_5(%arg0: i32) -> i32 {
    %c0_i32 = arith.constant 0 : i32
    %c0_i32_0 = arith.constant 0 : i32
    return %c0_i32 : i32
  }
  func.func @transform_6(%arg0: i32) -> (i32, i32) {
    %c0_i32 = arith.constant 0 : i32
    %c0_i32_0 = arith.constant 0 : i32
    %c0_i32_1 = arith.constant 0 : i32
    return %c0_i32, %c0_i32_0 : i32, i32
  }
  func.func @transform_7(%arg0: i32) -> (i32, i32, i32) {
    %c0_i32 = arith.constant 0 : i32
    %c0_i32_0 = arith.constant 0 : i32
    %c0_i32_1 = arith.constant 0 : i32
    %c0_i32_2 = arith.constant 0 : i32
    return %c0_i32, %c0_i32_0, %c0_i32_1 : i32, i32, i32
  }
  func.func @transform_8(%arg0: i32) -> i32 {
    %c0_i32 = arith.constant 0 : i32
    %c0_i32_0 = arith.constant 0 : i32
    return %c0_i32 : i32
  }
}

</mosaic_0001>

<llo_original>
// kernel: tpu_custom_call.1
$region0: #{tpu_custom_call.1}
  #allocation0 [shape = 'u32[]', space=smem, size = 0x4, offset = 0x4, fixed_abs, tag = 'smem constant byte address 0x4 - core index']
  #allocation1 [shape = 'u32[72,128]{1,0:T(1,128)}', space=vmem, size = 0x9000, scoped, tag = 'internal scratch']
  #allocation2 [shape = 'f32[8,128]{1,0:T(8,128)}', space=vmem, size = 0x1000, scoped, tag = 'scratch operand']
  #allocation3 [shape = 'f32[8,128]{1,0:T(8,128)}', space=vmem, size = 0x1000, scoped, tag = 'scratch operand']
  %s0 = inlined_call_operand.hbm [shape: bf16[8,512], index: 0, kind: input, shape index: {}]
  %s1 = inlined_call_operand.hbm [shape: bf16[512,128], index: 1, kind: input, shape index: {}]
  %s2 = inlined_call_operand.vmem [shape: f32[1,128], index: 2, kind: input, shape index: {}]
  %s3 = inlined_call_operand.vmem [shape: f32[1,128], index: 3, kind: input, shape index: {}]
  %s4 = inlined_call_operand.hbm [shape: f32[3,384], index: 4, kind: input, shape index: {}]
  %s5 = inlined_call_operand.vmem [shape: f32[3], index: 5, kind: input, shape index: {}]
  %s6 = inlined_call_operand.vmem [shape: f32[8,2], index: 6, kind: input, shape index: {}]
  %s7 = inlined_call_operand.hbm [shape: f32[3,8,8], index: 7, kind: output, shape index: {0}]
  %s8 = inlined_call_operand.hbm [shape: f32[3], index: 8, kind: output, shape index: {1}]
  %9 = xla_tuple %s7, %s8
  %s10 = sld [smem:[#allocation0]]
  $region101: #{tpu_custom_call.1} parent=0
    _
  %s12 = ssub.s32 1, %s10
  %s13 = scalar_select 0, %s12, %s10
  $region1: #{tpu_custom_call.1} parent=0
    #allocation4 [shape = 'u8[4096]{0}', space=vmem, size = 0x1000, scoped, tag = 'input window, operand 0']
    #allocation5 [shape = 's32[2]{0}', space=sflag, size = 0x8, scoped, tag = 'scoped memory for tpu_custom_call.1']
    #allocation6 [shape = 's32[2]{0}', space=sflag, size = 0x8, scoped, tag = 'scoped memory for tpu_custom_call.1']
    #allocation7 [shape = 's32[2]{0}', space=sflag, size = 0x8, scoped, tag = 'scoped memory for tpu_custom_call.1']
    #allocation8 [shape = 's32[2]{0}', space=sflag, size = 0x8, scoped, tag = 'scoped memory for tpu_custom_call.1']
    #allocation9 [shape = 'u8[65536]{0}', space=vmem, size = 0x10000, scoped, tag = 'input window, operand 1']
    #allocation10 [shape = 's32[2]{0}', space=sflag, size = 0x8, scoped, tag = 'scoped memory for tpu_custom_call.1']
    #allocation11 [shape = 'u8[6144]{0}', space=vmem, size = 0x1800, scoped, tag = 'input window, operand 4, single buffered']
    #allocation12 [shape = 'u8[512]{0}', space=smem, size = 0x200, scoped, tag = 'input window, operand 5, single buffered']
    #allocation13 [shape = 'u8[12288]{0}', space=vmem, size = 0x3000, scoped, tag = 'output window, operand 0, single buffered']
    #allocation14 [shape = 'u8[512]{0}', space=smem, size = 0x200, scoped, tag = 'output window, operand 1, single buffered']
    %14 = vsyncpa [#allocation5], 0
    %s15 = scalar_lea.sflag [#allocation5], 1
    %16 = vsyncpa %s15, 0
    %17 = vsyncpa [#allocation10], 0
    %s18 = scalar_lea.sflag [#allocation10], 1
    %19 = vsyncpa %s18, 0
    %20 = vsyncpa [#allocation8], 0
    %21 = vsyncpa [#allocation6], 0
    %22 = vsyncpa [#allocation7], 0
    loop: start=0, step=1, limit=6
    $region2: #{tpu_custom_call.1} parent=1 // loop_pre_header
      _
    $region3: #{tpu_custom_call.1} parent=1 // loop_header
      %s24 = sphi 0, %s28
      %p25 = scmp.ge.s32.totalorder %s24, 6
      %s34 = sphi 0, %s36
      %s37 = sphi 0, %s34
      %s38 = sphi 0, %s37
      %s54 = sphi 0, %s38
      %s60 = sphi 0, %s62
      %s63 = sphi 0, %s60
      %s64 = sphi 0, %s63
      %s80 = sphi 0, %s64
      %s84 = sphi 0, %s84
      %s86 = sphi 0, %s84
      %s87 = sphi 0, %s86
      %s101 = sphi 0, %s87
      %s105 = sphi 0, %s105
      %s107 = sphi 0, %s105
      %s108 = sphi 0, %s107
      %s122 = sphi 0, %s108
      %s126 = sphi 0, %s126
      %s128 = sphi 0, %s126
      %s129 = sphi 0, %s128
      %s143 = sphi 0, %s129
      %s147 = sphi 0, %s147
      %s149 = sphi 0, %s147
      %s150 = sphi 0, %s149
      %s164 = sphi 0, %s150
      %s168 = sphi 0, %s168
      %s170 = sphi 0, %s168
      %s171 = sphi 0, %s170
      %s185 = sphi 0, %s171
      %s189 = sphi 0, %s189
      %s191 = sphi 0, %s189
      %s192 = sphi 0, %s191
      %s206 = sphi 0, %s192
      %s210 = sphi 0, %s210
      %s212 = sphi 0, %s210
      %s213 = sphi 0, %s212
      %s227 = sphi 0, %s213
    $region4: #{tpu_custom_call.1} parent=1 // loop_header_branch
      %27 = sbr.rel (%p25) target = $region8
    $region5: #{tpu_custom_call.1} parent=1 // loop_body
      %s29 = ssub.s32 %s24, 1
      %s30 = ssub.s32 %s24, 2
      %s31 = sadd.s32 %s24, 1
      %s32 = ssub.s32 %s24, %s31
      %p33 = scmp.eq.s32.totalorder %s32, 0
      %s35 = sadd.s32 %s34, 1
      %s36 = scalar_select %p33, %s34, %s35
      %p39 = pneg %p33
      %p40 = scmp.eq.s32.totalorder %s24, 3
      %p41 = por %p39, %p40
      %p42 = scmp.ne.s32.totalorder %s34, %s37
      %p43 = scmp.eq.s32.totalorder %s24, 0
      %p44 = por %p42, %p43
      %p45 = scmp.ne.s32.totalorder %s34, %s37
      %p46 = scmp.eq.s32.totalorder %s29, 3
      %p47 = por %p45, %p46
      %p48 = scmp.ne.s32.totalorder %s37, %s38
      %p49 = scmp.eq.s32.totalorder %s29, 0
      %p50 = por %p48, %p49
      %p51 = scmp.ne.s32.totalorder %s37, %s38
      %p52 = scmp.eq.s32.totalorder %s30, 3
      %p53 = por %p51, %p52
      %p55 = scmp.ne.s32.totalorder %s38, %s54
      %p56 = scmp.eq.s32.totalorder %s30, 0
      %p57 = por %p55, %p56
      %s58 = ssub.s32 %s24, %s31
      %p59 = scmp.eq.s32.totalorder %s58, 0
      %s61 = sadd.s32 %s60, 1
      %s62 = scalar_select %p59, %s60, %s61
      %p65 = pneg %p59
      %p66 = scmp.eq.s32.totalorder %s24, 3
      %p67 = por %p65, %p66
      %p68 = scmp.ne.s32.totalorder %s60, %s63
      %p69 = scmp.eq.s32.totalorder %s24, 0
      %p70 = por %p68, %p69
      %p71 = scmp.ne.s32.totalorder %s60, %s63
      %p72 = scmp.eq.s32.totalorder %s29, 3
      %p73 = por %p71, %p72
      %p74 = scmp.ne.s32.totalorder %s63, %s64
      %p75 = scmp.eq.s32.totalorder %s29, 0
      %p76 = por %p74, %p75
      %p77 = scmp.ne.s32.totalorder %s63, %s64
      %p78 = scmp.eq.s32.totalorder %s30, 3
      %p79 = por %p77, %p78
      %p81 = scmp.ne.s32.totalorder %s64, %s80
      %p82 = scmp.eq.s32.totalorder %s30, 0
      %p83 = por %p81, %p82
      %s85 = sadd.s32 %s84, 1
      %p88 = scmp.eq.s32.totalorder %s24, 3
      %p89 = scmp.ne.s32.totalorder %s84, %s86
      %p90 = scmp.eq.s32.totalorder %s24, 0
      %p91 = por %p89, %p90
      %p92 = scmp.ne.s32.totalorder %s84, %s86
      %p93 = scmp.eq.s32.totalorder %s29, 3
      %p94 = por %p92, %p93
      %p95 = scmp.ne.s32.totalorder %s86, %s87
      %p96 = scmp.eq.s32.totalorder %s29, 0
      %p97 = por %p95, %p96
      %p98 = scmp.ne.s32.totalorder %s86, %s87
      %p99 = scmp.eq.s32.totalorder %s30, 3
      %p100 = por %p98, %p99
      %p102 = scmp.ne.s32.totalorder %s87, %s101
      %p103 = scmp.eq.s32.totalorder %s30, 0
      %p104 = por %p102, %p103
      %s106 = sadd.s32 %s105, 1
      %p109 = scmp.eq.s32.totalorder %s24, 3
      %p110 = scmp.ne.s32.totalorder %s105, %s107
      %p111 = scmp.eq.s32.totalorder %s24, 0
      %p112 = por %p110, %p111
      %p113 = scmp.ne.s32.totalorder %s105, %s107
      %p114 = scmp.eq.s32.totalorder %s29, 3
      %p115 = por %p113, %p114
      %p116 = scmp.ne.s32.totalorder %s107, %s108
      %p117 = scmp.eq.s32.totalorder %s29, 0
      %p118 = por %p116, %p117
      %p119 = scmp.ne.s32.totalorder %s107, %s108
      %p120 = scmp.eq.s32.totalorder %s30, 3
      %p121 = por %p119, %p120
      %p123 = scmp.ne.s32.totalorder %s108, %s122
      %p124 = scmp.eq.s32.totalorder %s30, 0
      %p125 = por %p123, %p124
      %s127 = sadd.s32 %s126, 1
      %p130 = scmp.eq.s32.totalorder %s24, 3
      %p131 = scmp.ne.s32.totalorder %s126, %s128
      %p132 = scmp.eq.s32.totalorder %s24, 0
      %p133 = por %p131, %p132
      %p134 = scmp.ne.s32.totalorder %s126, %s128
      %p135 = scmp.eq.s32.totalorder %s29, 3
      %p136 = por %p134, %p135
      %p137 = scmp.ne.s32.totalorder %s128, %s129
      %p138 = scmp.eq.s32.totalorder %s29, 0
      %p139 = por %p137, %p138
      %p140 = scmp.ne.s32.totalorder %s128, %s129
      %p141 = scmp.eq.s32.totalorder %s30, 3
      %p142 = por %p140, %p141
      %p144 = scmp.ne.s32.totalorder %s129, %s143
      %p145 = scmp.eq.s32.totalorder %s30, 0
      %p146 = por %p144, %p145
      %s148 = sadd.s32 %s147, 1
      %p151 = scmp.eq.s32.totalorder %s24, 3
      %p152 = scmp.ne.s32.totalorder %s147, %s149
      %p153 = scmp.eq.s32.totalorder %s24, 0
      %p154 = por %p152, %p153
      %p155 = scmp.ne.s32.totalorder %s147, %s149
      %p156 = scmp.eq.s32.totalorder %s29, 3
      %p157 = por %p155, %p156
      %p158 = scmp.ne.s32.totalorder %s149, %s150
      %p159 = scmp.eq.s32.totalorder %s29, 0
      %p160 = por %p158, %p159
      %p161 = scmp.ne.s32.totalorder %s149, %s150
      %p162 = scmp.eq.s32.totalorder %s30, 3
      %p163 = por %p161, %p162
      %p165 = scmp.ne.s32.totalorder %s150, %s164
      %p166 = scmp.eq.s32.totalorder %s30, 0
      %p167 = por %p165, %p166
      %s169 = sadd.s32 %s168, 1
      %p172 = scmp.eq.s32.totalorder %s24, 3
      %p173 = scmp.ne.s32.totalorder %s168, %s170
      %p174 = scmp.eq.s32.totalorder %s24, 0
      %p175 = por %p173, %p174
      %p176 = scmp.ne.s32.totalorder %s168, %s170
      %p177 = scmp.eq.s32.totalorder %s29, 3
      %p178 = por %p176, %p177
      %p179 = scmp.ne.s32.totalorder %s170, %s171
      %p180 = scmp.eq.s32.totalorder %s29, 0
      %p181 = por %p179, %p180
      %p182 = scmp.ne.s32.totalorder %s170, %s171
      %p183 = scmp.eq.s32.totalorder %s30, 3
      %p184 = por %p182, %p183
      %p186 = scmp.ne.s32.totalorder %s171, %s185
      %p187 = scmp.eq.s32.totalorder %s30, 0
      %p188 = por %p186, %p187
      %s190 = sadd.s32 %s189, 1
      %p193 = scmp.eq.s32.totalorder %s24, 3
      %p194 = scmp.ne.s32.totalorder %s189, %s191
      %p195 = scmp.eq.s32.totalorder %s24, 0
      %p196 = por %p194, %p195
      %p197 = scmp.ne.s32.totalorder %s189, %s191
      %p198 = scmp.eq.s32.totalorder %s29, 3
      %p199 = por %p197, %p198
      %p200 = scmp.ne.s32.totalorder %s191, %s192
      %p201 = scmp.eq.s32.totalorder %s29, 0
      %p202 = por %p200, %p201
      %p203 = scmp.ne.s32.totalorder %s191, %s192
      %p204 = scmp.eq.s32.totalorder %s30, 3
      %p205 = por %p203, %p204
      %p207 = scmp.ne.s32.totalorder %s192, %s206
      %p208 = scmp.eq.s32.totalorder %s30, 0
      %p209 = por %p207, %p208
      %s211 = sadd.s32 %s210, 1
      %p214 = scmp.eq.s32.totalorder %s24, 3
      %p215 = scmp.ne.s32.totalorder %s210, %s212
      %p216 = scmp.eq.s32.totalorder %s24, 0
      %p217 = por %p215, %p216
      %p218 = scmp.ne.s32.totalorder %s210, %s212
      %p219 = scmp.eq.s32.totalorder %s29, 3
      %p220 = por %p218, %p219
      %p221 = scmp.ne.s32.totalorder %s212, %s213
      %p222 = scmp.eq.s32.totalorder %s29, 0
      %p223 = por %p221, %p222
      %p224 = scmp.ne.s32.totalorder %s212, %s213
      %p225 = scmp.eq.s32.totalorder %s30, 3
      %p226 = por %p224, %p225
      %p228 = scmp.ne.s32.totalorder %s213, %s227
      %p229 = scmp.eq.s32.totalorder %s30, 0
      %p230 = por %p228, %p229
      %p231 = scmp.le.s32.totalorder 1, %s24
      %p232 = scmp.lt.s32.totalorder %s24, 5
      %p233 = pnand %p231, %p232
      %p234 = pneg %p233
      // Predicated region
      $region9: #{tpu_custom_call.1} parent=5 // pred_check
        _
      $region10: #{tpu_custom_call.1} parent=5 // pred_check_branch
        %236 = sbr.rel (%p233) target = $region12
      $region11: #{tpu_custom_call.1} parent=5 // pred_region
        %s237 = ssub.s32 %s24, 1
        // Predicated region
        $region13: #{tpu_custom_call.1} parent=11 // pred_check
          %p238 = pneg %p97
        $region14: #{tpu_custom_call.1} parent=11 // pred_check_branch
          %240 = sbr.rel (%p238) target = $region16
        $region15: #{tpu_custom_call.1} parent=11 // pred_region
          _
        $region16: #{tpu_custom_call.1} parent=11 // pred_fallthru
          _
        // Predicated region
        $region17: #{tpu_custom_call.1} parent=11 // pred_check
          %p241 = pneg %p118
        $region18: #{tpu_custom_call.1} parent=11 // pred_check_branch
          %243 = sbr.rel (%p241) target = $region20
        $region19: #{tpu_custom_call.1} parent=11 // pred_region
          _
        $region20: #{tpu_custom_call.1} parent=11 // pred_fallthru
          _
        // Predicated region
        $region21: #{tpu_custom_call.1} parent=11 // pred_check
          %p244 = pneg %p139
        $region22: #{tpu_custom_call.1} parent=11 // pred_check_branch
          %246 = sbr.rel (%p244) target = $region24
        $region23: #{tpu_custom_call.1} parent=11 // pred_region
          %248 = vsyncadd [#allocation10], 0
          %s250 = sshll.u32 %s4, 4
          %s251 = int_to_ptr.hbm [resolvable:$true] %s250
          %s252 = sshll.u32 [#allocation11], 4
          %s253 = int_to_ptr.vmem [resolvable:$true] %s252
          %255 = dma.hbm_to_vmem [thread:$0]  %s251, 192, %s253, [#allocation10]
        $region24: #{tpu_custom_call.1} parent=11 // pred_fallthru
          _
        // Predicated region
        $region25: #{tpu_custom_call.1} parent=11 // pred_check
          %p256 = pneg %p160
        $region26: #{tpu_custom_call.1} parent=11 // pred_check_branch
          %258 = sbr.rel (%p256) target = $region28
        $region27: #{tpu_custom_call.1} parent=11 // pred_region
          %260 = vsyncadd [#allocation8], 0
          %s262 = sshll.u32 %s5, 4
          %s263 = int_to_ptr.vmem [resolvable:$true] %s262
          %265 = dma.vmem_to_smem %s263, 16, [#allocation12], [#allocation8]
        $region28: #{tpu_custom_call.1} parent=11 // pred_fallthru
          _
        // Predicated region
        $region29: #{tpu_custom_call.1} parent=11 // pred_check
          %p266 = pneg %p181
        $region30: #{tpu_custom_call.1} parent=11 // pred_check_branch
          %268 = sbr.rel (%p266) target = $region32
        $region31: #{tpu_custom_call.1} parent=11 // pred_region
          _
        $region32: #{tpu_custom_call.1} parent=11 // pred_fallthru
          _
      $region12: #{tpu_custom_call.1} parent=5 // pred_fallthru
        _
      %p269 = scmp.lt.s32.totalorder %s24, 4
      // Predicated region
      $region33: #{tpu_custom_call.1} parent=5 // pred_check
        %p270 = pneg %p269
      $region34: #{tpu_custom_call.1} parent=5 // pred_check_branch
        %272 = sbr.rel (%p270) target = $region36
      $region35: #{tpu_custom_call.1} parent=5 // pred_region
        // Predicated region
        $region37: #{tpu_custom_call.1} parent=35 // pred_check
          %p273 = pneg %p44
        $region38: #{tpu_custom_call.1} parent=35 // pred_check_branch
          %275 = sbr.rel (%p273) target = $region40
        $region39: #{tpu_custom_call.1} parent=35 // pred_region
          %s276 = sand.u32 %s34, 1
          %s277 = scalar_lea.sflag [#allocation5], %s276
          %s278 = sand.u32 %s34, 1
          %s279 = smul.addr %s278, 4
          %s280 = scalar_lea.vmem [#allocation4], %s279
          %282 = vsyncadd %s277, 0
          %s283 = smul.addr %s24, 4
          %s284 = scalar_lea.hbm %s0, %s283
          %s286 = sshll.u32 %s284, 4
          %s287 = int_to_ptr.hbm [resolvable:$true] %s286
          %s288 = sshll.u32 %s280, 4
          %s289 = int_to_ptr.vmem [resolvable:$true] %s288
          %291 = dma.hbm_to_vmem [thread:$0]  %s287, 64, %s289, %s277
        $region40: #{tpu_custom_call.1} parent=35 // pred_fallthru
          _
        // Predicated region
        $region41: #{tpu_custom_call.1} parent=35 // pred_check
          %p292 = pneg %p70
        $region42: #{tpu_custom_call.1} parent=35 // pred_check_branch
          %294 = sbr.rel (%p292) target = $region44
        $region43: #{tpu_custom_call.1} parent=35 // pred_region
          %s295 = sand.u32 %s24, 1
          %s296 = scalar_lea.sflag [#allocation10], %s295
          %s297 = sand.u32 %s60, 1
          %s298 = smul.addr %s297, 64
          %s299 = scalar_lea.vmem [#allocation9], %s298
          %s300 = smul.u32 16, %s24
          %302 = vsyncadd %s296, 0
          %s303 = smul.addr %s300, 4
          %s304 = scalar_lea.hbm %s1, %s303
          %s305 = sshll.u32 %s304, 4
          %s306 = int_to_ptr.hbm [resolvable:$true] %s305
          %s307 = sshll.u32 %s299, 4
          %s308 = int_to_ptr.vmem [resolvable:$true] %s307
          %313 = dma.hbm_to_vmem [thread:$0]  %s306, 1024, %s308, %s296, 64, 64, 4
        $region44: #{tpu_custom_call.1} parent=35 // pred_fallthru
          _
      $region36: #{tpu_custom_call.1} parent=5 // pred_fallthru
        _
      %p314 = scmp.le.s32.totalorder 1, %s24
      %p315 = scmp.lt.s32.totalorder %s24, 5
      %p316 = pnand %p314, %p315
      %p317 = pneg %p316
      // Predicated region
      $region45: #{tpu_custom_call.1} parent=5 // pred_check
        _
      $region46: #{tpu_custom_call.1} parent=5 // pred_check_branch
        %319 = sbr.rel (%p316) target = $region48
      $region47: #{tpu_custom_call.1} parent=5 // pred_region
        %s320 = ssub.s32 %s24, 1
        %s321 = sand.u32 %s37, 1
        %s322 = scalar_lea.sflag [#allocation5], %s321
        %s323 = sand.u32 %s37, 1
        %s324 = smul.addr %s323, 4
        %s325 = scalar_lea.vmem [#allocation4], %s324
        // Predicated region
        $region49: #{tpu_custom_call.1} parent=47 // pred_check
          %p326 = pneg %p50
        $region50: #{tpu_custom_call.1} parent=47 // pred_check_branch
          %328 = sbr.rel (%p326) target = $region52
        $region51: #{tpu_custom_call.1} parent=47 // pred_region
          %330 = dma.done %s322, 64
        $region52: #{tpu_custom_call.1} parent=47 // pred_fallthru
          _
        %s331 = sand.u32 %s29, 1
        %s332 = scalar_lea.sflag [#allocation10], %s331
        %s333 = sand.u32 %s63, 1
        %s334 = smul.addr %s333, 64
        %s335 = scalar_lea.vmem [#allocation9], %s334
        // Predicated region
        $region53: #{tpu_custom_call.1} parent=47 // pred_check
          %p336 = pneg %p76
        $region54: #{tpu_custom_call.1} parent=47 // pred_check_branch
          %338 = sbr.rel (%p336) target = $region56
        $region55: #{tpu_custom_call.1} parent=47 // pred_region
          %340 = dma.done %s332, 1024
        $region56: #{tpu_custom_call.1} parent=47 // pred_fallthru
          _
        // Predicated region
        $region57: #{tpu_custom_call.1} parent=47 // pred_check
          %p341 = pneg %p139
        $region58: #{tpu_custom_call.1} parent=47 // pred_check_branch
          %343 = sbr.rel (%p341) target = $region60
        $region59: #{tpu_custom_call.1} parent=47 // pred_region
          %345 = dma.done [#allocation10], 192
        $region60: #{tpu_custom_call.1} parent=47 // pred_fallthru
          _
        // Predicated region
        $region61: #{tpu_custom_call.1} parent=47 // pred_check
          %p346 = pneg %p160
        $region62: #{tpu_custom_call.1} parent=47 // pred_check_branch
          %348 = sbr.rel (%p346) target = $region64
        $region63: #{tpu_custom_call.1} parent=47 // pred_region
          %350 = dma.done [#allocation8], 16
        $region64: #{tpu_custom_call.1} parent=47 // pred_fallthru
          _
        %351 = sfence
        %s352 = sand.u32 %s37, 1
        %s353 = scalar_lea.sflag [#allocation5], %s352
        %s354 = sand.u32 %s37, 1
        %s355 = smul.addr %s354, 4
        %s356 = scalar_lea.vmem [#allocation4], %s355
        %p357 = pneg %p50
        %p358 = pneg %p47
        %s359 = sand.u32 %s29, 1
        %s360 = scalar_lea.sflag [#allocation10], %s359
        %s361 = sand.u32 %s63, 1
        %s362 = smul.addr %s361, 64
        %s363 = scalar_lea.vmem [#allocation9], %s362
        %p364 = pneg %p76
        %p365 = pneg %p73
        %p366 = pneg %p97
        %p367 = pneg %p94
        %p368 = pneg %p118
        %p369 = pneg %p115
        %p370 = pneg %p139
        %p371 = pneg %p136
        %p372 = pneg %p160
        %p373 = pneg %p157
        %p374 = pneg %p181
        %p375 = pneg %p178
        %p376 = pneg %p202
        %p377 = pneg %p199
        %p378 = pneg %p223
        %p379 = pneg %p220
        %s380 = smul.u32 16, %s29
        %p381 = scmp.eq.s32.totalorder %s29, 0
        // Predicated region
        $region65: #{tpu_custom_call.1} parent=47 // pred_check
          %p382 = pneg %p381
        $region66: #{tpu_custom_call.1} parent=47 // pred_check_branch
          %384 = sbr.rel (%p382) target = $region68
        $region67: #{tpu_custom_call.1} parent=47 // pred_region
          %385 = vst [vmem:[#allocation2] sm:$0xff] 0.0
          %386 = vst [vmem:[#allocation3] sm:$0xff] 0.0
        $region68: #{tpu_custom_call.1} parent=47 // pred_fallthru
          _
        %v387 = vld [vmem:[%s325] sm:$0xf]
        %v388 = vld [vmem:[%s335] sm:$0xf]
        %v389 = vld [vmem:[%s335 + $0x4] sm:$0xf]
        %v390 = vld [vmem:[%s335 + $0x8] sm:$0xf]
        %v391 = vld [vmem:[%s335 + $0xc] sm:$0xf]
        %v392 = vld [vmem:[%s335 + $0x10] sm:$0xf]
        %v393 = vld [vmem:[%s335 + $0x14] sm:$0xf]
        %v394 = vld [vmem:[%s335 + $0x18] sm:$0xf]
        %v395 = vld [vmem:[%s335 + $0x1c] sm:$0xf]
        %v396 = vld [vmem:[%s335 + $0x20] sm:$0xf]
        %v397 = vld [vmem:[%s335 + $0x24] sm:$0xf]
        %v398 = vld [vmem:[%s335 + $0x28] sm:$0xf]
        %v399 = vld [vmem:[%s335 + $0x2c] sm:$0xf]
        %v400 = vld [vmem:[%s335 + $0x30] sm:$0xf]
        %v401 = vld [vmem:[%s335 + $0x34] sm:$0xf]
        %v402 = vld [vmem:[%s335 + $0x38] sm:$0xf]
        %v403 = vld [vmem:[%s335 + $0x3c] sm:$0xf]
        %v420 = vunpack.c.l.b16 %v388
        %v421 = vunpack.c.l.b16 %v389
        %v422 = vunpack.c.l.b16 %v390
        %v423 = vunpack.c.l.b16 %v391
        %v424 = vunpack.c.l.b16 %v392
        %v425 = vunpack.c.l.b16 %v393
        %v426 = vunpack.c.l.b16 %v394
        %v427 = vunpack.c.l.b16 %v395
        %v428 = vunpack.c.l.b16 %v396
        %v429 = vunpack.c.l.b16 %v397
        %v430 = vunpack.c.l.b16 %v398
        %v431 = vunpack.c.l.b16 %v399
        %v432 = vunpack.c.l.b16 %v400
        %v433 = vunpack.c.l.b16 %v401
        %v434 = vunpack.c.l.b16 %v402
        %v435 = vunpack.c.l.b16 %v403
        %v436 = vpack.c.b16 %v421, %v420
        %v437 = vpack.c.b16 %v423, %v422
        %v438 = vpack.c.b16 %v425, %v424
        %v439 = vpack.c.b16 %v427, %v426
        %v440 = vpack.c.b16 %v429, %v428
        %v441 = vpack.c.b16 %v431, %v430
        %v442 = vpack.c.b16 %v433, %v432
        %v443 = vpack.c.b16 %v435, %v434
        %452 = vmatpush.bf16.msra.mxu0 %v443
        %453 = vmatpush.bf16.msra.mxu0 %v442
        %454 = vmatpush.bf16.msra.mxu0 %v441
        %455 = vmatpush.bf16.msra.mxu0 %v440
        %456 = vmatpush.bf16.msra.mxu0 %v439
        %457 = vmatpush.bf16.msra.mxu0 %v438
        %458 = vmatpush.bf16.msra.mxu0 %v437
        %459 = vmatpush.bf16.msra.mxu0 %v436
        %460 = vmatmul.bf16.gmra.mxu0 %v387
        %v461 = vpop.f32.mrf.mxu0
        %v462 = vadd.f32 0.0, %v461
        %v463 = vpop.f32.mrf.mxu0
        %464 = vdwg.mxu0
        %p465 = scmp.lt.s32.totalorder %s29, 2
        // Predicated region
        $region69: #{tpu_custom_call.1} parent=47 // pred_check
          %p466 = pneg %p465
        $region70: #{tpu_custom_call.1} parent=47 // pred_check_branch
          %468 = sbr.rel (%p466) target = $region72
        $region71: #{tpu_custom_call.1} parent=47 // pred_region
          %v469 = vld [vmem:[#allocation2] sm:$0xff]
          %v470 = vadd.f32 %v469, %v462
          %471 = vst [vmem:[#allocation2] sm:$0xff] %v470
        $region72: #{tpu_custom_call.1} parent=47 // pred_fallthru
          _
        %p472 = scmp.ge.s32.totalorder %s29, 2
        // Predicated region
        $region73: #{tpu_custom_call.1} parent=47 // pred_check
          %p473 = pneg %p472
        $region74: #{tpu_custom_call.1} parent=47 // pred_check_branch
          %475 = sbr.rel (%p473) target = $region76
        $region75: #{tpu_custom_call.1} parent=47 // pred_region
          %v476 = vld [vmem:[#allocation3] sm:$0xff]
          %v477 = vadd.f32 %v476, %v462
          %478 = vst [vmem:[#allocation3] sm:$0xff] %v477
        $region76: #{tpu_custom_call.1} parent=47 // pred_fallthru
          _
        %p479 = scmp.eq.s32.totalorder %s29, 3
        // Predicated region
        $region77: #{tpu_custom_call.1} parent=47 // pred_check
          %p480 = pneg %p479
        $region78: #{tpu_custom_call.1} parent=47 // pred_check_branch
          %482 = sbr.rel (%p480) target = $region80
        $region79: #{tpu_custom_call.1} parent=47 // pred_region
          %v483 = vld [vmem:[#allocation2] sm:$0xff]
          %v484 = vld [vmem:[%s2] sm:$0x1]
          %v486 = vperm.slane %v484, 0
          %v488 = vadd.f32 %v483, %v486
          %v489 = vmul.f32 %v488, %v488
          %490 = vadd.xlane.f32.xlu0 %v489
          %v491 = vpop.xlane.xlu0 %490
          %v492 = vmax.f32 %v491, 1e-24
          %v493 = vrsqrt.pop %v492
          %v494 = vmul.f32 %v493, %v492
          %v495 = vmul.f32 %v494, %v493
          %v496 = vmul.f32 0.5, %v495
          %v497 = vsub.f32 1.5, %v496
          %v498 = vmul.f32 %v493, %v497
          %vm499 = vweird.f32 %v492
          %vm500 = vweird.f32 %v493
          %vm501 = vmor %vm499, %vm500
          %v502 = vsel %vm501, %v493, %v498
          %v503 = vmul.f32 %v488, %v502
          %v504 = vld [vmem:[#allocation3] sm:$0xff]
          %v505 = vld [vmem:[%s3] sm:$0x1]
          %v507 = vperm.slane %v505, 0
          %v509 = vadd.f32 %v504, %v507
          %v510 = vmul.f32 %v509, %v509
          %511 = vadd.xlane.f32.xlu0 %v510
          %v512 = vpop.xlane.xlu0 %511
          %v513 = vmax.f32 %v512, 1e-24
          %v514 = vrsqrt.pop %v513
          %v515 = vmul.f32 %v514, %v513
          %v516 = vmul.f32 %v515, %v514
          %v517 = vmul.f32 0.5, %v516
          %v518 = vsub.f32 1.5, %v517
          %v519 = vmul.f32 %v514, %v518
          %vm520 = vweird.f32 %v513
          %vm521 = vweird.f32 %v514
          %vm522 = vmor %vm520, %vm521
          %v523 = vsel %vm522, %v514, %v519
          %v524 = vmul.f32 %v509, %v523
          %v525 = vld [vmem:[#allocation11] sm:$0x7]
          %v526 = vld [vmem:[#allocation11 + $0x4] sm:$0x7]
          %v527 = vld [vmem:[#allocation11 + $0x8] sm:$0x7]
          %v529 = vrot.slane %v525, 3
          %vm530 = vcmask 1040384
          %v531 = vsel %vm530, %v525, %v529
          %vm532 = vcmask 1041409
          %v533 = vsel %vm532, %v525, %v529
          %v534 = vrot.slane %v533, 1
          %vm535 = vcmask 1042434
          %v536 = vsel %vm535, %v525, %v529
          %v537 = vrot.slane %v536, 2
          %v538 = vperm.slane %v531, 0
          %v539 = vperm.slane %v534, 0
          %v540 = vperm.slane %v537, 0
          %v544 = vmul.f32 %v503, %v538
          %v545 = vmul.f32 %v503, %v539
          %v546 = vmul.f32 %v503, %v540
          %v548 = vrot.slane %v527, 3
          %v549 = vsel %vm530, %v527, %v548
          %v550 = vsel %vm532, %v527, %v548
          %v551 = vrot.slane %v550, 1
          %v552 = vsel %vm535, %v527, %v548
          %v553 = vrot.slane %v552, 2
          %v554 = vperm.slane %v549, 0
          %v555 = vperm.slane %v551, 0
          %v556 = vperm.slane %v553, 0
          %v560 = vadd.f32 %v544, %v554
          %v561 = vadd.f32 %v545, %v555
          %v562 = vadd.f32 %v546, %v556
          %563 = vmatpush.xpose.msra.mxu0 0.0
          %564 = vmatpush.xpose.msra.mxu0 0.0
          %565 = vmatpush.xpose.msra.mxu0 0.0
          %566 = vmatpush.xpose.msra.mxu0 0.0
          %567 = vmatpush.xpose.msra.mxu0 0.0
          %568 = vmatpush.xpose.msra.mxu0 0.0
          %569 = vmatpush.xpose.msra.mxu0 0.0
          %570 = vmatpush.xpose.msra.mxu0 0.0
          %571 = vmatpush.xpose.msra.mxu0 0.0
          %572 = vmatpush.xpose.msra.mxu0 0.0
          %573 = vmatpush.xpose.msra.mxu0 0.0
          %574 = vmatpush.xpose.msra.mxu0 0.0
          %575 = vmatpush.xpose.msra.mxu0 0.0
          %576 = vmatpush.xpose.msra.mxu0 0.0
          %577 = vmatpush.xpose.msra.mxu0 0.0
          %578 = vmatpush.xpose.msra.mxu0 %v524
          %579 = vmatmul.f32.gmra.mxu0 %v560
          %v580 = vpop.f32.mrf.mxu0
          %v581 = vadd.f32 0.0, %v580
          %582 = vmatmul.f32.gmra.mxu0 %v561
          %v583 = vpop.f32.mrf.mxu0
          %v584 = vadd.f32 0.0, %v583
          %585 = vmatmul.f32.gmra.mxu0 %v562
          %v586 = vpop.f32.mrf.mxu0
          %v587 = vadd.f32 0.0, %v586
          %588 = vdwg.mxu0
          %v589 = vlaneseq
          %v590 = vshrl.u32 %v589, 7
          %v591 = vlaneseq
          %v592 = vand.u32 %v591, 127
          %vm593 = vcmp.eq.s32.totalorder %v590, %v592
          %v594 = vsel %vm593, 1, 0
          %v595 = vcvt.s32.f32 %v594
          %v596 = vperm.slane %v526, 0
          %v597 = vmul.f32 %v503, %v596
          %598 = vadd.xlane.f32.xlu0 %v597
          %v599 = vpop.xlane.xlu0 %598
          %v600 = vadd.f32 %v581, %v599
          %s601 = sld [smem:[#allocation12]]
          %v602 = vstv %s601
          %v603 = vadd.f32 %v600, %v602
          %vm604 = vcmask 64512
          %605 = vst.msk [vmem:[#allocation13] sm:$0xff] %vm604, %v603
          %v606 = vperm.slane %v526, 1
          %v607 = vmul.f32 %v503, %v606
          %608 = vadd.xlane.f32.xlu0 %v607
          %v609 = vpop.xlane.xlu0 %608
          %v610 = vadd.f32 %v584, %v609
          %s611 = sld [smem:[#allocation12 + $0x1]]
          %v612 = vstv %s611
          %v613 = vadd.f32 %v610, %v612
          %s614 = scalar_lea.vmem [#allocation13], 8
          %615 = vst.msk [vmem:[%s614] sm:$0xff] %vm604, %v613
          %v616 = vperm.slane %v526, 2
          %v617 = vmul.f32 %v503, %v616
          %618 = vadd.xlane.f32.xlu0 %v617
          %v619 = vpop.xlane.xlu0 %618
          %v620 = vadd.f32 %v587, %v619
          %s621 = sld [smem:[#allocation12 + $0x2]]
          %v622 = vstv %s621
          %v623 = vadd.f32 %v620, %v622
          %s624 = scalar_lea.vmem [#allocation13], 16
          %625 = vst.msk [vmem:[%s624] sm:$0xff] %vm604, %v623
          %v626 = vmul.f32 %v595, 2.0
          %v627 = vsub.f32 1.0, %v626
          %v628 = vmul.f32 %v603, %v627
          %v629 = vmax.f32 %v628, 0.0
          %v630 = vand.u32 2147483647, %v628
          %v631 = vsub.f32 0.0, %v630
          %v632 = vmul.f32 %v631, 1.442695
          %v633 = vpow.pop %v632
          %v634 = vadd.f32 %v633, 1.0
          %v635 = vlog2.pop %v634
          %v636 = vmul.f32 %v635, 0.6931472
          %v637 = vadd.f32 %v629, %v636
          %v638 = vsub.f32 1.0, %v595
          %v639 = vmul.f32 %v638, 0.125
          %v640 = vadd.f32 %v639, %v595
          %v641 = vmul.f32 %v637, %v640
          %v642 = vsel %vm604, %v641, 0.0
          %643 = vadd.xlane.f32.xlu0 %v642
          %v644 = vpop.xlane.xlu0 %643
          %v645 = vrot.slane %v644, 4
          %v646 = vadd.f32 %v644, %v645
          %v647 = vrot.slane %v646, 2
          %v648 = vadd.f32 %v646, %v647
          %v649 = vrot.slane %v648, 1
          %v650 = vadd.f32 %v648, %v649
          %s651 = vtos %v650
          %s652 = smul.f32 %s651, 0.015625
          %v653 = vmul.f32 %v613, %v595
          %v654 = vsel %vm604, %v653, 0.0
          %655 = vadd.xlane.f32.xlu0 %v654
          %v656 = vpop.xlane.xlu0 %655
          %v657 = vmul.f32 %v623, %v595
          %v658 = vsel %vm604, %v657, 0.0
          %659 = vadd.xlane.f32.xlu0 %v658
          %v660 = vpop.xlane.xlu0 %659
          %v661 = vld [vmem:[%s6] sm:$0xff]
          %v662 = vsub.f32 %v656, %v661
          %v663 = vand.u32 2147483647, %v662
          %v664 = vsub.f32 %v660, %v661
          %v665 = vand.u32 2147483647, %v664
          %667 = vrot.lane.b32.xlu0 %v665, 127
          %v668 = vpop.permute.xlu0 %667
          %v670 = vadd.f32 %v663, %v668
          %vm671 = vcmask 7168
          %v672 = vsel %vm671, %v670, 0.0
          %673 = vadd.xlane.f32.xlu0 %v672
          %v674 = vpop.xlane.xlu0 %673
          %v675 = vrot.slane %v674, 4
          %v676 = vadd.f32 %v674, %v675
          %v677 = vrot.slane %v676, 2
          %v678 = vadd.f32 %v676, %v677
          %v679 = vrot.slane %v678, 1
          %v680 = vadd.f32 %v678, %v679
          %s681 = vtos %v680
          %s682 = smul.f32 %s681, 0.0625
          %s683 = smul.f32 %s682, 0.0001
          %s684 = sadd.f32 %s652, %s683
          %s685 = scalar_lea.smem [#allocation14], 0
          %686 = sst [smem:[%s685]] %s684
          %s687 = scalar_lea.smem [#allocation14], 1
          %688 = sst [smem:[%s687]] %s652
          %s689 = scalar_lea.smem [#allocation14], 2
          %690 = sst [smem:[%s689]] %s682
        $region80: #{tpu_custom_call.1} parent=47 // pred_fallthru
          _
        // Predicated region
        $region81: #{tpu_custom_call.1} parent=47 // pred_check
          %p691 = pneg %p199
        $region82: #{tpu_custom_call.1} parent=47 // pred_check_branch
          %693 = sbr.rel (%p691) target = $region84
        $region83: #{tpu_custom_call.1} parent=47 // pred_region
          %695 = vsyncadd [#allocation6], 0
          %s696 = sshll.u32 [#allocation13], 4
          %s697 = int_to_ptr.vmem [resolvable:$true] %s696
          %s698 = sshll.u32 %s7, 4
          %s699 = int_to_ptr.hbm [resolvable:$true] %s698
          %704 = dma.vmem_to_hbm [thread:$0]  %s697, 384, %s699, [#allocation6], 128, 128, 8
        $region84: #{tpu_custom_call.1} parent=47 // pred_fallthru
          _
        // Predicated region
        $region85: #{tpu_custom_call.1} parent=47 // pred_check
          %p705 = pneg %p220
        $region86: #{tpu_custom_call.1} parent=47 // pred_check_branch
          %707 = sbr.rel (%p705) target = $region88
        $region87: #{tpu_custom_call.1} parent=47 // pred_region
          %709 = vsyncadd [#allocation7], 0
          %s711 = sshll.u32 %s8, 4
          %s712 = int_to_ptr.hbm [resolvable:$true] %s711
          %714 = dma.smem_to_hbm [#allocation14], 16, %s712, [#allocation7]
        $region88: #{tpu_custom_call.1} parent=47 // pred_fallthru
          _
        // Predicated region
        $region89: #{tpu_custom_call.1} parent=47 // pred_check
          %p715 = pneg %p199
        $region90: #{tpu_custom_call.1} parent=47 // pred_check_branch
          %717 = sbr.rel (%p715) target = $region92
        $region91: #{tpu_custom_call.1} parent=47 // pred_region
          %719 = dma.done [#allocation6], 384
        $region92: #{tpu_custom_call.1} parent=47 // pred_fallthru
          _
        // Predicated region
        $region93: #{tpu_custom_call.1} parent=47 // pred_check
          %p720 = pneg %p220
        $region94: #{tpu_custom_call.1} parent=47 // pred_check_branch
          %722 = sbr.rel (%p720) target = $region96
        $region95: #{tpu_custom_call.1} parent=47 // pred_region
          %724 = dma.done [#allocation7], 16
        $region96: #{tpu_custom_call.1} parent=47 // pred_fallthru
          _
        %725 = sfence
      $region48: #{tpu_custom_call.1} parent=5 // pred_fallthru
        _
      %p726 = scmp.le.s32.totalorder 2, %s24
      // Predicated region
      $region97: #{tpu_custom_call.1} parent=5 // pred_check
        %p727 = pneg %p726
      $region98: #{tpu_custom_call.1} parent=5 // pred_check_branch
        %729 = sbr.rel (%p727) target = $region100
      $region99: #{tpu_custom_call.1} parent=5 // pred_region
        %s730 = ssub.s32 %s24, 2
      $region100: #{tpu_custom_call.1} parent=5 // pred_fallthru
        _
    $region6: #{tpu_custom_call.1} parent=1 // loop_footer
      %s28 = sadd.s32 1, %s24
    $region7: #{tpu_custom_call.1} parent=1 // loop_footer_branch
      %23 = sbr.rel target = $region3
    $region8: #{tpu_custom_call.1} parent=1 // loop_exit
      _
    %731 = vsyncpa [#allocation5], 1
    %s732 = scalar_lea.sflag [#allocation5], 1
    %733 = vsyncpa %s732, 1
    %734 = vsyncpa [#allocation10], 1
    %s735 = scalar_lea.sflag [#allocation10], 1
    %736 = vsyncpa %s735, 1
    %737 = vsyncpa [#allocation6], 1
    %s738 = scalar_lea.sflag [#allocation6], 1
    %739 = vsyncpa %s738, 1
    %740 = vsyncpa [#allocation7], 1
    %s741 = scalar_lea.sflag [#allocation7], 1
    %742 = vsyncpa %s741, 1
    %743 = vsyncpa [#allocation8], 1
    %s744 = scalar_lea.sflag [#allocation8], 1
    %745 = vsyncpa %s744, 1

</llo_original>
